<compile_context>
chip_gen: v6e
topology: v6e:2x2x1
jax: 0.10.0
libtpu: 0.0.40
codegen_flags: <defaults>
</compile_context>

<pallas_src>
import math

import jax
import jax.numpy as jnp
from jax.experimental import pallas as pl
from jax.experimental.pallas import tpu as pltpu


_LANE = 128  # TPU lane width


def _packed_linear_add_relu_kernel(wb_ref, x_ref, other_ref, o_ref):
    """o = relu(x @ W' + other) on one lane-dense (TR, 128) packed tile.

    wb_ref:    (128, 128) block-diagonal weight (16 copies of W^T), resident.
    x_ref:     (TR, 128)  packed activations (16 original rows per packed row).
    other_ref: (1, 1)     scalar addend in SMEM.
    o_ref:     (TR, 128)  packed output tile.
    """
    acc = jnp.dot(x_ref[...], wb_ref[...], preferred_element_type=jnp.float32)
    acc = acc + other_ref[0, 0]
    o_ref[...] = jnp.maximum(acc, 0.0).astype(o_ref.dtype)


def _round_up(x, m):
    return ((x + m - 1) // m) * m


def linear_add_relu(x, w, other, *, row_tile=2048):
    """relu(x @ w.T + other) with the Linear acting on the last axis of x.

    x:     (..., K) float32
    w:     (N, K)  float32 (PyTorch nn.Linear weight layout, bias=False)
    other: Python / 0-d scalar addend (runtime value, no recompile per value)
    """
    *lead, k_in = x.shape
    n_out, k_w = w.shape
    assert k_in == k_w, (k_in, k_w)
    # The zero-copy 128-lane pack needs K == N and K | 128 (holds for 8, 8).
    assert n_out == k_in and _LANE % k_in == 0, (n_out, k_in)

    group = _LANE // k_in                       # original rows per packed row (16)
    m = math.prod(lead) if lead else 1

    # Zero-copy pack: row-major (M, K) -> (M/group, 128).  Pad M only up to a
    # multiple of 128 (so the packed row count is a multiple of 8 sublanes),
    # and only when actually needed.
    x2 = x.reshape(m, k_in)
    m_pad = _round_up(m, _LANE)
    if m_pad != m:
        x2 = jnp.pad(x2, ((0, m_pad - m), (0, 0)))
    r = m_pad // group                          # packed rows, multiple of 8
    x_packed = x2.reshape(r, _LANE)             # contiguous reshape, no copy

    # 128x128 block-diagonal weight: blockdiag of `group` copies of W^T.
    # Built once in the wrapper; negligible (64 KiB) and resident in VMEM.
    w_block = jnp.kron(jnp.eye(group, dtype=w.dtype), w.T.astype(jnp.float32))

    other_arr = jnp.asarray(other, dtype=jnp.float32).reshape(1, 1)

    # Row-tile selection: big tiles (default 2048 rows -> 1 MiB/buffer) to
    # amortize per-step overhead; force >= 2 grid steps when possible so both
    # v7x TensorCores get work (no effect on single-core v5e/v6e).
    tr = min(row_tile, r)
    if tr == r and r >= 16:
        tr = _round_up(r // 2, 8)
    grid = (pl.cdiv(r, tr),)

    out_packed = pl.pallas_call(
        _packed_linear_add_relu_kernel,
        out_shape=jax.ShapeDtypeStruct((r, _LANE), jnp.float32),
        grid=grid,
        in_specs=[
            # Block-diagonal weight: full (128, 128) block, resident every step.
            pl.BlockSpec((_LANE, _LANE), lambda i: (0, 0)),
            # Packed activations: lane-dense (TR, 128) tile marching along rows.
            pl.BlockSpec((tr, _LANE), lambda i: (i, 0)),
            # `other`: whole (1, 1) scalar in SMEM.
            pl.BlockSpec(memory_space=pltpu.MemorySpace.SMEM),
        ],
        out_specs=pl.BlockSpec((tr, _LANE), lambda i: (i, 0)),
        compiler_params=pltpu.CompilerParams(
            dimension_semantics=("parallel",),
        ),
    )(w_block, x_packed, other_arr)

    # Zero-copy unpack back to (..., N); slice off padding only if it exists.
    out2d = out_packed.reshape(m_pad, n_out)
    if m_pad != m:
        out2d = out2d[:m]
    return out2d.reshape(*lead, n_out)


if __name__ == "__main__":
    in_features, out_features = 8, 8
    other = 1.0

    key = jax.random.PRNGKey(0)
    kx, kw = jax.random.split(key)

    # The module's Linear(8, 8) requires the trailing dim to equal 8, so the
    # example input is (1, 8, 64, 8)  ->  M = 512 rows.
    x = jax.random.normal(kx, (1, 8, 64, in_features), dtype=jnp.float32)

    # Deterministic Linear weight, PyTorch convention (out_features, in_features).
    bound = 1.0 / math.sqrt(in_features)
    w = jax.random.uniform(kw, (out_features, in_features), jnp.float32,
                           minval=-bound, maxval=bound)

    out = linear_add_relu(x, w, other)
    jax.block_until_ready(out)

    # Reference in plain JAX.
    ref = jnp.maximum(jnp.einsum("...k,nk->...n", x, w) + other, 0.0)
    assert out.shape == (*x.shape[:-1], out_features)
    assert jnp.allclose(out, ref, atol=1e-5, rtol=1e-5)

    # Also exercise a multi-step tiled/pipelined grid path (grid=(4,)).
    out_tiled = linear_add_relu(x, w, other, row_tile=8)
    jax.block_until_ready(out_tiled)
    assert jnp.allclose(out_tiled, ref, atol=1e-5, rtol=1e-5)

    print("KERNEL_OK")
</pallas_src>

<mosaic_0001>
module attributes {stable_mosaic.version = 11 : i64} {
  func.func @_packed_linear_add_relu_kernel(%arg0: i32, %arg1: memref<128x128xf32, #tpu.memory_space<vmem>>, %arg2: memref<16x128xf32, #tpu.memory_space<vmem>>, %arg3: memref<1x1xf32, #tpu.memory_space<smem>>, %arg4: memref<16x128xf32, #tpu.memory_space<vmem>>) attributes {dimension_semantics = [#tpu.dimension_semantics<parallel>], iteration_bounds = array<i64: 2>, scalar_prefetch = 0 : i64, scratch_operands = 0 : i64, tpu.core_type = #tpu.core_type<tc>, window_params = [{pipeline_mode = #tpu.pipeline_mode<synchronous>, transform_indices = @transform_0, window_bounds = array<i64: 128, 128>}, {transform_indices = @transform_1, window_bounds = array<i64: 16, 128>}, {transform_indices = @transform_2, window_bounds = array<i64: 1, 1>}, {transform_indices = @transform_3, window_bounds = array<i64: 16, 128>}]} {
    %c0 = arith.constant 0 : index
    %c0_0 = arith.constant 0 : index
    %0 = vector.load %arg2[%c0, %c0_0] : memref<16x128xf32, #tpu.memory_space<vmem>>, vector<16x128xf32>
    %c0_1 = arith.constant 0 : index
    %c0_2 = arith.constant 0 : index
    %1 = vector.load %arg1[%c0_1, %c0_2] : memref<128x128xf32, #tpu.memory_space<vmem>>, vector<128x128xf32>
    %cst = arith.constant dense<0.000000e+00> : vector<16x128xf32>
    %2 = tpu.matmul %0, %1, %cst {dimension_numbers = #tpu.dot_dimension_numbers<[1], [0], [0], [1], [0, 0, 1, 1], [], []>} : vector<16x128xf32>, vector<128x128xf32>, vector<16x128xf32> -> vector<16x128xf32>
    %c0_3 = arith.constant 0 : index
    %c0_4 = arith.constant 0 : index
    %3 = memref.load %arg3[%c0_3, %c0_4] : memref<1x1xf32, #tpu.memory_space<smem>>
    %4 = vector.broadcast %3 : f32 to vector<16x128xf32>
    %5 = arith.addf %2, %4 : vector<16x128xf32>
    %cst_5 = arith.constant 0.000000e+00 : f32
    %6 = vector.broadcast %cst_5 : f32 to vector<16x128xf32>
    %7 = arith.maximumf %5, %6 : vector<16x128xf32>
    %c0_6 = arith.constant 0 : index
    %c0_7 = arith.constant 0 : index
    %8 = vector.load %arg4[%c0_6, %c0_7] : memref<16x128xf32, #tpu.memory_space<vmem>>, vector<16x128xf32>
    tpu.vector_store %arg4[%c0_6, %c0_7], %7 {strides = array<i32>} : memref<16x128xf32, #tpu.memory_space<vmem>>, vector<16x128xf32>,
    return
  }
  func.func @transform_0(%arg0: i32) -> (i32, i32) {
    %c0_i32 = arith.constant 0 : i32
    %c0_i32_0 = arith.constant 0 : i32
    %c0_i32_1 = arith.constant 0 : i32
    return %c0_i32, %c0_i32_0 : i32, i32
  }
  func.func @transform_1(%arg0: i32) -> (i32, i32) {
    %c0_i32 = arith.constant 0 : i32
    %c0_i32_0 = arith.constant 0 : i32
    return %arg0, %c0_i32 : i32, i32
  }
  func.func @transform_2(%arg0: i32) -> (i32, i32) {
    %c0_i32 = arith.constant 0 : i32
    %c0_i32_0 = arith.constant 0 : i32
    %c0_i32_1 = arith.constant 0 : i32
    return %c0_i32, %c0_i32_0 : i32, i32
  }
  func.func @transform_3(%arg0: i32) -> (i32, i32) {
    %c0_i32 = arith.constant 0 : i32
    %c0_i32_0 = arith.constant 0 : i32
    return %arg0, %c0_i32 : i32, i32
  }
}

</mosaic_0001>

<llo_original>
// kernel: tpu_custom_call.1
$region0: #{tpu_custom_call.1}
  #allocation0 [shape = 'u32[]', space=smem, size = 0x4, offset = 0x4, fixed_abs, tag = 'smem constant byte address 0x4 - core index']
  #allocation1 [shape = 'u32[144,128]{1,0:T(1,128)}', space=vmem, size = 0x12000, scoped, tag = 'internal scratch']
  #allocation2 [shape = 'f32[1,1]{1,0:T(1,128)S(6)}', space=smem, size = 0x200, scoped, tag = 'scoped memory for tpu_custom_call.1']
  %s0 = inlined_call_operand.hbm [shape: f32[128,128], index: 0, kind: input, shape index: {}]
  %s1 = inlined_call_operand.hbm [shape: f32[32,128], index: 1, kind: input, shape index: {}]
  %s2 = inlined_call_operand.<no memory space> [shape: f32[1,1], index: 2, kind: input, shape index: {}]
  %s3 = inlined_call_operand.hbm [shape: f32[32,128], index: 3, kind: output, shape index: {}]
  %s4 = sld [smem:[#allocation0]]
  $region53: #{tpu_custom_call.1} parent=0
    _
  %s6 = ssub.s32 1, %s4
  %s7 = scalar_select 0, %s6, %s4
  %8 = sst [smem:[#allocation2]] %s2
  $region1: #{tpu_custom_call.1} parent=0
    #allocation3 [shape = 'u8[65536]{0}', space=vmem, size = 0x10000, scoped, tag = 'input window, operand 0, single buffered']
    #allocation4 [shape = 's32[2]{0}', space=sflag, size = 0x8, scoped, tag = 'scoped memory for tpu_custom_call.1']
    #allocation5 [shape = 's32[2]{0}', space=sflag, size = 0x8, scoped, tag = 'scoped memory for tpu_custom_call.1']
    #allocation6 [shape = 'u8[16384]{0}', space=vmem, size = 0x4000, scoped, tag = 'input window, operand 1']
    #allocation7 [shape = 's32[2]{0}', space=sflag, size = 0x8, scoped, tag = 'scoped memory for tpu_custom_call.1']
    #allocation8 [shape = 'u8[16384]{0}', space=vmem, size = 0x4000, scoped, tag = 'output window, operand 0']
    %9 = vsyncpa [#allocation4], 0
    %10 = vsyncpa [#allocation7], 0
    %s11 = scalar_lea.sflag [#allocation7], 1
    %12 = vsyncpa %s11, 0
    %13 = vsyncpa [#allocation5], 0
    %s14 = scalar_lea.sflag [#allocation5], 1
    %15 = vsyncpa %s14, 0
    loop: start=0, step=1, limit=4
    $region2: #{tpu_custom_call.1} parent=1 // loop_pre_header
      _
    $region3: #{tpu_custom_call.1} parent=1 // loop_header
      %s17 = sphi 0, %s21
      %p18 = scmp.ge.s32.totalorder %s17, 4
      %s25 = sphi 0, %s25
      %s27 = sphi 0, %s25
      %s28 = sphi 0, %s27
      %s42 = sphi 0, %s28
      %s48 = sphi 0, %s50
      %s51 = sphi 0, %s48
      %s52 = sphi 0, %s51
      %s68 = sphi 0, %s52
      %s72 = sphi 0, %s72
      %s74 = sphi 0, %s72
      %s75 = sphi 0, %s74
      %s89 = sphi 0, %s75
      %s95 = sphi 0, %s97
      %s98 = sphi 0, %s95
      %s99 = sphi 0, %s98
      %s115 = sphi 0, %s99
    $region4: #{tpu_custom_call.1} parent=1 // loop_header_branch
      %20 = sbr.rel (%p18) target = $region8
    $region5: #{tpu_custom_call.1} parent=1 // loop_body
      %s22 = ssub.s32 %s17, 1
      %s23 = ssub.s32 %s17, 2
      %s24 = sadd.s32 %s17, 1
      %s26 = sadd.s32 %s25, 1
      %p29 = scmp.eq.s32.totalorder %s17, 1
      %p30 = scmp.ne.s32.totalorder %s25, %s27
      %p31 = scmp.eq.s32.totalorder %s17, 0
      %p32 = por %p30, %p31
      %p33 = scmp.ne.s32.totalorder %s25, %s27
      %p34 = scmp.eq.s32.totalorder %s22, 1
      %p35 = por %p33, %p34
      %p36 = scmp.ne.s32.totalorder %s27, %s28
      %p37 = scmp.eq.s32.totalorder %s22, 0
      %p38 = por %p36, %p37
      %p39 = scmp.ne.s32.totalorder %s27, %s28
      %p40 = scmp.eq.s32.totalorder %s23, 1
      %p41 = por %p39, %p40
      %p43 = scmp.ne.s32.totalorder %s28, %s42
      %p44 = scmp.eq.s32.totalorder %s23, 0
      %p45 = por %p43, %p44
      %s46 = ssub.s32 %s17, %s24
      %p47 = scmp.eq.s32.totalorder %s46, 0
      %s49 = sadd.s32 %s48, 1
      %s50 = scalar_select %p47, %s48, %s49
      %p53 = pneg %p47
      %p54 = scmp.eq.s32.totalorder %s17, 1
      %p55 = por %p53, %p54
      %p56 = scmp.ne.s32.totalorder %s48, %s51
      %p57 = scmp.eq.s32.totalorder %s17, 0
      %p58 = por %p56, %p57
      %p59 = scmp.ne.s32.totalorder %s48, %s51
      %p60 = scmp.eq.s32.totalorder %s22, 1
      %p61 = por %p59, %p60
      %p62 = scmp.ne.s32.totalorder %s51, %s52
      %p63 = scmp.eq.s32.totalorder %s22, 0
      %p64 = por %p62, %p63
      %p65 = scmp.ne.s32.totalorder %s51, %s52
      %p66 = scmp.eq.s32.totalorder %s23, 1
      %p67 = por %p65, %p66
      %p69 = scmp.ne.s32.totalorder %s52, %s68
      %p70 = scmp.eq.s32.totalorder %s23, 0
      %p71 = por %p69, %p70
      %s73 = sadd.s32 %s72, 1
      %p76 = scmp.eq.s32.totalorder %s17, 1
      %p77 = scmp.ne.s32.totalorder %s72, %s74
      %p78 = scmp.eq.s32.totalorder %s17, 0
      %p79 = por %p77, %p78
      %p80 = scmp.ne.s32.totalorder %s72, %s74
      %p81 = scmp.eq.s32.totalorder %s22, 1
      %p82 = por %p80, %p81
      %p83 = scmp.ne.s32.totalorder %s74, %s75
      %p84 = scmp.eq.s32.totalorder %s22, 0
      %p85 = por %p83, %p84
      %p86 = scmp.ne.s32.totalorder %s74, %s75
      %p87 = scmp.eq.s32.totalorder %s23, 1
      %p88 = por %p86, %p87
      %p90 = scmp.ne.s32.totalorder %s75, %s89
      %p91 = scmp.eq.s32.totalorder %s23, 0
      %p92 = por %p90, %p91
      %s93 = ssub.s32 %s17, %s24
      %p94 = scmp.eq.s32.totalorder %s93, 0
      %s96 = sadd.s32 %s95, 1
      %s97 = scalar_select %p94, %s95, %s96
      %p100 = pneg %p94
      %p101 = scmp.eq.s32.totalorder %s17, 1
      %p102 = por %p100, %p101
      %p103 = scmp.ne.s32.totalorder %s95, %s98
      %p104 = scmp.eq.s32.totalorder %s17, 0
      %p105 = por %p103, %p104
      %p106 = scmp.ne.s32.totalorder %s95, %s98
      %p107 = scmp.eq.s32.totalorder %s22, 1
      %p108 = por %p106, %p107
      %p109 = scmp.ne.s32.totalorder %s98, %s99
      %p110 = scmp.eq.s32.totalorder %s22, 0
      %p111 = por %p109, %p110
      %p112 = scmp.ne.s32.totalorder %s98, %s99
      %p113 = scmp.eq.s32.totalorder %s23, 1
      %p114 = por %p112, %p113
      %p116 = scmp.ne.s32.totalorder %s99, %s115
      %p117 = scmp.eq.s32.totalorder %s23, 0
      %p118 = por %p116, %p117
      %p119 = scmp.le.s32.totalorder 1, %s17
      %p120 = scmp.lt.s32.totalorder %s17, 3
      %p121 = pnand %p119, %p120
      %p122 = pneg %p121
      // Predicated region
      $region9: #{tpu_custom_call.1} parent=5 // pred_check
        _
      $region10: #{tpu_custom_call.1} parent=5 // pred_check_branch
        %124 = sbr.rel (%p121) target = $region12
      $region11: #{tpu_custom_call.1} parent=5 // pred_region
        %s125 = ssub.s32 %s17, 1
        // Predicated region
        $region13: #{tpu_custom_call.1} parent=11 // pred_check
          %p126 = pneg %p38
        $region14: #{tpu_custom_call.1} parent=11 // pred_check_branch
          %128 = sbr.rel (%p126) target = $region16
        $region15: #{tpu_custom_call.1} parent=11 // pred_region
          %s130 = ssub.s32 2048, 2048
          %131 = vsyncadd [#allocation4], %s130
          %s132 = sshll.u32 [#allocation3], 4
          %s133 = int_to_ptr.vmem [resolvable:$true] %s132
          %138 = dma.hbm_to_vmem [thread:$0]  %s0, 2048, %s133, [#allocation4], 128, 128, 8
        $region16: #{tpu_custom_call.1} parent=11 // pred_fallthru
          _
        // Predicated region
        $region17: #{tpu_custom_call.1} parent=11 // pred_check
          %p139 = pneg %p85
        $region18: #{tpu_custom_call.1} parent=11 // pred_check_branch
          %141 = sbr.rel (%p139) target = $region20
        $region19: #{tpu_custom_call.1} parent=11 // pred_region
          _
        $region20: #{tpu_custom_call.1} parent=11 // pred_fallthru
          _
      $region12: #{tpu_custom_call.1} parent=5 // pred_fallthru
        _
      %p142 = scmp.lt.s32.totalorder %s17, 2
      // Predicated region
      $region21: #{tpu_custom_call.1} parent=5 // pred_check
        %p143 = pneg %p142
      $region22: #{tpu_custom_call.1} parent=5 // pred_check_branch
        %145 = sbr.rel (%p143) target = $region24
      $region23: #{tpu_custom_call.1} parent=5 // pred_region
        // Predicated region
        $region25: #{tpu_custom_call.1} parent=23 // pred_check
          %p146 = pneg %p58
        $region26: #{tpu_custom_call.1} parent=23 // pred_check_branch
          %148 = sbr.rel (%p146) target = $region28
        $region27: #{tpu_custom_call.1} parent=23 // pred_region
          %s149 = sand.u32 %s48, 1
          %s150 = scalar_lea.sflag [#allocation7], %s149
          %s151 = sand.u32 %s48, 1
          %s152 = smul.addr %s151, 16
          %s153 = scalar_lea.vmem [#allocation6], %s152
          %s154 = smul.u32 2, %s17
          %s156 = ssub.s32 256, 256
          %157 = vsyncadd %s150, %s156
          %s158 = smul.addr %s154, 128
          %s159 = scalar_lea.hbm %s1, %s158
          %s160 = sshll.u32 %s153, 4
          %s161 = int_to_ptr.vmem [resolvable:$true] %s160
          %166 = dma.hbm_to_vmem [thread:$0]  %s159, 256, %s161, %s150, 128, 128, 8
        $region28: #{tpu_custom_call.1} parent=23 // pred_fallthru
          _
      $region24: #{tpu_custom_call.1} parent=5 // pred_fallthru
        _
      %p167 = scmp.le.s32.totalorder 1, %s17
      %p168 = scmp.lt.s32.totalorder %s17, 3
      %p169 = pnand %p167, %p168
      %p170 = pneg %p169
      // Predicated region
      $region29: #{tpu_custom_call.1} parent=5 // pred_check
        _
      $region30: #{tpu_custom_call.1} parent=5 // pred_check_branch
        %172 = sbr.rel (%p169) target = $region32
      $region31: #{tpu_custom_call.1} parent=5 // pred_region
        %s173 = ssub.s32 %s17, 1
        // Predicated region
        $region33: #{tpu_custom_call.1} parent=31 // pred_check
          %p174 = pneg %p38
        $region34: #{tpu_custom_call.1} parent=31 // pred_check_branch
          %176 = sbr.rel (%p174) target = $region36
        $region35: #{tpu_custom_call.1} parent=31 // pred_region
          %177 = dma.done [#allocation4], 2048
        $region36: #{tpu_custom_call.1} parent=31 // pred_fallthru
          _
        %s178 = sand.u32 %s51, 1
        %s179 = scalar_lea.sflag [#allocation7], %s178
        %s180 = sand.u32 %s51, 1
        %s181 = smul.addr %s180, 16
        %s182 = scalar_lea.vmem [#allocation6], %s181
        // Predicated region
        $region37: #{tpu_custom_call.1} parent=31 // pred_check
          %p183 = pneg %p64
        $region38: #{tpu_custom_call.1} parent=31 // pred_check_branch
          %185 = sbr.rel (%p183) target = $region40
        $region39: #{tpu_custom_call.1} parent=31 // pred_region
          %186 = dma.done %s179, 256
        $region40: #{tpu_custom_call.1} parent=31 // pred_fallthru
          _
        %p187 = pneg %p38
        %p188 = pneg %p35
        %s189 = sand.u32 %s51, 1
        %s190 = scalar_lea.sflag [#allocation7], %s189
        %s191 = sand.u32 %s51, 1
        %s192 = smul.addr %s191, 16
        %s193 = scalar_lea.vmem [#allocation6], %s192
        %p194 = pneg %p64
        %p195 = pneg %p61
        %p196 = pneg %p85
        %p197 = pneg %p82
        %p198 = pneg %p111
        %p199 = pneg %p108
        %s200 = sand.u32 %s98, 1
        %s201 = scalar_lea.sflag [#allocation5], %s200
        %s202 = sand.u32 %s98, 1
        %s203 = smul.addr %s202, 16
        %s204 = scalar_lea.vmem [#allocation8], %s203
        %s205 = smul.u32 2, %s22
        %s206 = smul.u32 2, %s22
        %v207 = vld [vmem:[%s182] sm:$0xff]
        %v208 = vld [vmem:[%s182 + $0x8] sm:$0xff]
        %v209 = vld [vmem:[#allocation3] sm:$0xff]
        %v210 = vld [vmem:[#allocation3 + $0x8] sm:$0xff]
        %v211 = vld [vmem:[#allocation3 + $0x10] sm:$0xff]
        %v212 = vld [vmem:[#allocation3 + $0x18] sm:$0xff]
        %v213 = vld [vmem:[#allocation3 + $0x20] sm:$0xff]
        %v214 = vld [vmem:[#allocation3 + $0x28] sm:$0xff]
        %v215 = vld [vmem:[#allocation3 + $0x30] sm:$0xff]
        %v216 = vld [vmem:[#allocation3 + $0x38] sm:$0xff]
        %v217 = vld [vmem:[#allocation3 + $0x40] sm:$0xff]
        %v218 = vld [vmem:[#allocation3 + $0x48] sm:$0xff]
        %v219 = vld [vmem:[#allocation3 + $0x50] sm:$0xff]
        %v220 = vld [vmem:[#allocation3 + $0x58] sm:$0xff]
        %v221 = vld [vmem:[#allocation3 + $0x60] sm:$0xff]
        %v222 = vld [vmem:[#allocation3 + $0x68] sm:$0xff]
        %v223 = vld [vmem:[#allocation3 + $0x70] sm:$0xff]
        %v224 = vld [vmem:[#allocation3 + $0x78] sm:$0xff]
        %s225 = sld [smem:[#allocation2]]
        %v226 = vstv %s225
        %227 = vmatprep.subr.mxu0 0.0
        %228 = vmatpush1.msra.mxu0 %v224
        %229 = vmatprep.subr.mxu0 0.0
        %230 = vmatpush1.msra.mxu0 %v223
        %231 = vmatprep.subr.mxu0 0.0
        %232 = vmatpush1.msra.mxu0 %v222
        %233 = vmatprep.subr.mxu0 0.0
        %234 = vmatpush1.msra.mxu0 %v221
        %235 = vmatprep.subr.mxu0 0.0
        %236 = vmatpush1.msra.mxu0 %v220
        %237 = vmatprep.subr.mxu0 0.0
        %238 = vmatpush1.msra.mxu0 %v219
        %239 = vmatprep.subr.mxu0 0.0
        %240 = vmatpush1.msra.mxu0 %v218
        %241 = vmatprep.subr.mxu0 0.0
        %242 = vmatpush1.msra.mxu0 %v217
        %243 = vmatprep.subr.mxu0 0.0
        %244 = vmatpush1.msra.mxu0 %v216
        %245 = vmatprep.subr.mxu0 0.0
        %246 = vmatpush1.msra.mxu0 %v215
        %247 = vmatprep.subr.mxu0 0.0
        %248 = vmatpush1.msra.mxu0 %v214
        %249 = vmatprep.subr.mxu0 0.0
        %250 = vmatpush1.msra.mxu0 %v213
        %251 = vmatprep.subr.mxu0 0.0
        %252 = vmatpush1.msra.mxu0 %v212
        %253 = vmatprep.subr.mxu0 0.0
        %254 = vmatpush1.msra.mxu0 %v211
        %255 = vmatprep.subr.mxu0 0.0
        %256 = vmatpush1.msra.mxu0 %v210
        %257 = vmatprep.subr.mxu0 0.0
        %258 = vmatpush1.msra.mxu0 %v209
        %259 = vmatprep.subr.mxu0 0.0
        %260 = vmatpush2.msra.mxu0 0.0
        %261 = vmatprep.subr.mxu0 0.0
        %262 = vmatpush2.msra.mxu0 0.0
        %263 = vmatprep.subr.mxu0 0.0
        %264 = vmatpush2.msra.mxu0 0.0
        %265 = vmatprep.subr.mxu0 0.0
        %266 = vmatpush2.msra.mxu0 0.0
        %267 = vmatprep.subr.mxu0 0.0
        %268 = vmatpush2.msra.mxu0 0.0
        %269 = vmatprep.subr.mxu0 0.0
        %270 = vmatpush2.msra.mxu0 0.0
        %271 = vmatprep.subr.mxu0 0.0
        %272 = vmatpush2.msra.mxu0 0.0
        %273 = vmatprep.subr.mxu0 0.0
        %274 = vmatpush2.msra.mxu0 0.0
        %275 = vmatprep.subr.mxu0 0.0
        %276 = vmatpush2.msra.mxu0 0.0
        %277 = vmatprep.subr.mxu0 0.0
        %278 = vmatpush2.msra.mxu0 0.0
        %279 = vmatprep.subr.mxu0 0.0
        %280 = vmatpush2.msra.mxu0 0.0
        %281 = vmatprep.subr.mxu0 0.0
        %282 = vmatpush2.msra.mxu0 0.0
        %283 = vmatprep.subr.mxu0 0.0
        %284 = vmatpush2.msra.mxu0 0.0
        %285 = vmatprep.subr.mxu0 0.0
        %286 = vmatpush2.msra.mxu0 0.0
        %287 = vmatprep.subr.mxu0 0.0
        %288 = vmatpush2.msra.mxu0 0.0
        %289 = vmatprep.subr.mxu0 0.0
        %290 = vmatpush2.msra.mxu0 0.0
        %291 = vmatprep.mubr.f32.mxu0 0.0
        %292 = vmatmul.mubr.f32.gmra.mxu0 %v207
        %v293 = vpop.f32.mrf.mxu0
        %v294 = vadd.f32 %v226, %v293
        %v295 = vpop.f32.mrf.mxu0
        %296 = vmatprep.mubr.f32.mxu0 0.0
        %297 = vmatmul.mubr.f32.gmra.mxu0 %v208
        %v298 = vpop.f32.mrf.mxu0
        %v299 = vadd.f32 %v226, %v298
        %v300 = vpop.f32.mrf.mxu0
        %301 = vdwg.mxu0
        %v302 = vmax.f32 %v294, 0.0
        %v303 = vmax.f32 %v299, 0.0
        %304 = vst [vmem:[%s204] sm:$0xff] %v302
        %305 = vst [vmem:[%s204 + $0x8] sm:$0xff] %v303
        %s306 = sand.u32 %s98, 1
        %s307 = scalar_lea.sflag [#allocation5], %s306
        %s308 = sand.u32 %s98, 1
        %s309 = smul.addr %s308, 16
        %s310 = scalar_lea.vmem [#allocation8], %s309
        // Predicated region
        $region41: #{tpu_custom_call.1} parent=31 // pred_check
          %p311 = pneg %p108
        $region42: #{tpu_custom_call.1} parent=31 // pred_check_branch
          %313 = sbr.rel (%p311) target = $region44
        $region43: #{tpu_custom_call.1} parent=31 // pred_region
          %s314 = smul.u32 2, %s22
          %s316 = ssub.s32 256, 256
          %317 = vsyncadd %s307, %s316
          %s318 = smul.addr %s314, 128
          %s319 = scalar_lea.hbm %s3, %s318
          %s320 = sshll.u32 %s310, 4
          %s321 = int_to_ptr.vmem [resolvable:$true] %s320
          %326 = dma.vmem_to_hbm [thread:$0]  %s321, 256, %s319, %s307, 128, 128, 8
        $region44: #{tpu_custom_call.1} parent=31 // pred_fallthru
          _
      $region32: #{tpu_custom_call.1} parent=5 // pred_fallthru
        _
      %p327 = scmp.le.s32.totalorder 2, %s17
      // Predicated region
      $region45: #{tpu_custom_call.1} parent=5 // pred_check
        %p328 = pneg %p327
      $region46: #{tpu_custom_call.1} parent=5 // pred_check_branch
        %330 = sbr.rel (%p328) target = $region48
      $region47: #{tpu_custom_call.1} parent=5 // pred_region
        %s331 = ssub.s32 %s17, 2
        // Predicated region
        $region49: #{tpu_custom_call.1} parent=47 // pred_check
          %p332 = pneg %p114
        $region50: #{tpu_custom_call.1} parent=47 // pred_check_branch
          %334 = sbr.rel (%p332) target = $region52
        $region51: #{tpu_custom_call.1} parent=47 // pred_region
          %s335 = sand.u32 %s99, 1
          %s336 = scalar_lea.sflag [#allocation5], %s335
          %s337 = sand.u32 %s99, 1
          %s338 = smul.addr %s337, 16
          %s339 = scalar_lea.vmem [#allocation8], %s338
          %340 = dma.done %s336, 256
        $region52: #{tpu_custom_call.1} parent=47 // pred_fallthru
          _
      $region48: #{tpu_custom_call.1} parent=5 // pred_fallthru
        _
    $region6: #{tpu_custom_call.1} parent=1 // loop_footer
      %s21 = sadd.s32 1, %s17
    $region7: #{tpu_custom_call.1} parent=1 // loop_footer_branch
      %16 = sbr.rel target = $region3
    $region8: #{tpu_custom_call.1} parent=1 // loop_exit
      _
    %341 = vsyncpa [#allocation4], 1
    %s342 = scalar_lea.sflag [#allocation4], 1
    %343 = vsyncpa %s342, 1
    %344 = vsyncpa [#allocation7], 1
    %s345 = scalar_lea.sflag [#allocation7], 1
    %346 = vsyncpa %s345, 1
    %347 = vsyncpa [#allocation5], 1
    %s348 = scalar_lea.sflag [#allocation5], 1
    %349 = vsyncpa %s348, 1

</llo_original>
